<compile_context>
chip_gen: v7x
topology: tpu7x:2x2x1
jax: 0.10.0
libtpu: 0.0.40
codegen_flags: <defaults>
</compile_context>

<pallas_src>
import functools

import jax
import jax.numpy as jnp
from jax.experimental import pallas as pl
from jax.experimental.pallas import tpu as pltpu


def _round_up(a, b):
    return ((a + b - 1) // b) * b


def _vq_argmin_kernel(x_ref, e_ref, e2_ref, idx_ref, min_sc, arg_sc, *,
                      tk, bf16_matmul):
    """One (row-tile, codebook-chunk) step of the nearest-code search.

    Grid = (row tiles [parallel], K chunks [arbitrary]).  Running (min, argmin)
    are carried in VMEM scratch along the K axis; the lane-dense (1, 1, tm)
    index slab is written once on the last chunk.
    """
    kj = pl.program_id(1)

    @pl.when(kj == 0)
    def _init():
        min_sc[...] = jnp.full_like(min_sc, jnp.inf)
        arg_sc[...] = jnp.zeros_like(arg_sc)

    x = x_ref[...]        # (tm, D)  row tile of flattened inputs
    e = e_ref[...]        # (tk, D)  codebook chunk
    e2h = e2_ref[...]     # (1, tk)  0.5*||e_k||^2 (1e30 sentinel on pad rows)

    if bf16_matmul:
        xm = x.astype(jnp.bfloat16)
        em = e.astype(jnp.bfloat16)
    else:
        xm, em = x, e

    # Contract on the last dim of both operands (no transpose relayout); MXU.
    xe = jax.lax.dot_general(
        xm, em, dimension_numbers=(((1,), (1,)), ((), ())),
        preferred_element_type=jnp.float32)                    # (tm, tk)

    # argmin_k ||x - e_k||^2 == argmin_k (0.5*||e_k||^2 - x.e_k):
    # the per-row ||x||^2 term and the factor 2 are argmin-invariant.
    score = e2h - xe                                           # (tm, tk)

    chunk_min = jnp.min(score, axis=-1, keepdims=True)         # (tm, 1)
    chunk_arg = (jnp.argmin(score, axis=-1).astype(jnp.int32)[:, None]
                 + kj * tk)                                    # (tm, 1) global

    better = chunk_min < min_sc[...]
    min_sc[...] = jnp.where(better, chunk_min, min_sc[...])
    arg_sc[...] = jnp.where(better, chunk_arg, arg_sc[...])

    @pl.when(kj == pl.num_programs(1) - 1)
    def _finalize():
        # Lane-dense writeback: (1, 1, tm), tm a multiple of 128 -> unmasked vst.
        idx_ref[...] = arg_sc[...].reshape(1, 1, -1)


def _vmem_cap_bytes():
    cap = 64 << 20                       # conservative (v7x-sized) fallback
    try:
        cap = int(pltpu.get_tpu_info().vmem_capacity_bytes)
    except Exception:
        pass
    # ~25% headroom; <=~96-100 MiB on 128 MiB chips, >=32 MiB floor.
    return max(32 << 20, min(cap * 3 // 4, 100 << 20))


def _vmem_need_bytes(tm, tk, d):
    return (2 * tm * d * 4        # x tile, double-buffered
            + 2 * tk * d * 4      # codebook chunk, double-buffered
            + 2 * tk * 4          # e2_half chunk
            + 2 * tm * 4          # index output block
            + 2 * tm * 4          # running min / argmin scratch
            + 4 * tm * tk * 4)    # xe / score / argmin temporaries (~3-4x)


def vector_quantization(x, embedding, *, tm=1024, bf16_matmul=None):
    """x: any-shape array whose total size is divisible by D.
    embedding: (K, D) codebook. Returns (quantized (N, D), indices (1, N))."""
    K, D = embedding.shape
    emb32 = embedding.astype(jnp.float32)
    xf = x.reshape(-1, D).astype(jnp.float32)
    N = xf.shape[0]

    if bf16_matmul is None:
        # bf16 MXU only pays off for large contraction dims; note it may flip
        # argmin on exact/near ties relative to the f32 reference.
        bf16_matmul = D >= 256

    # ---- tile selection (VMEM-aware, chip-aware) ---------------------------
    tk = min(512, _round_up(K, 128))                  # codebook chunk (lanes)
    n128 = _round_up(max(N, 1), 128)
    tm = max(128, min(_round_up(tm, 128), n128))      # row tile (sublanes)
    if n128 >= 256:
        # keep >= 2 row tiles so the "parallel" axis can shard across 2 TCs (v7x).
        tm = min(tm, _round_up((n128 + 1) // 2, 128))
    vmem_cap = _vmem_cap_bytes()
    while _vmem_need_bytes(tm, tk, D) > vmem_cap and (tm > 128 or tk > 128):
        if tm > 128:
            tm = max(128, _round_up(tm // 2, 128))
        else:
            tk = max(128, _round_up(tk // 2, 128))

    # ---- pad rows to a multiple of tm, codes to a multiple of tk -----------
    n_pad = _round_up(N, tm)
    if n_pad != N:
        xf = jnp.concatenate([xf, jnp.zeros((n_pad - N, D), xf.dtype)], axis=0)
    g = n_pad // tm

    k_pad = _round_up(K, tk)
    nk = k_pad // tk
    # 0.5*||e||^2 hoisted out of the (sequential) grid loop entirely.
    e2_half = 0.5 * jnp.sum(emb32 * emb32, axis=-1)
    if k_pad != K:
        emb32 = jnp.concatenate(
            [emb32, jnp.zeros((k_pad - K, D), emb32.dtype)], axis=0)
        e2_half = jnp.concatenate(
            [e2_half, jnp.full((k_pad - K,), 1e30, e2_half.dtype)], axis=0)
    e2_half = e2_half[None, :]                                   # (1, k_pad)

    kernel = functools.partial(_vq_argmin_kernel, tk=tk, bf16_matmul=bf16_matmul)

    idx_slab = pl.pallas_call(
        kernel,
        out_shape=jax.ShapeDtypeStruct((g, 1, tm), jnp.int32),
        grid_spec=pltpu.PrefetchScalarGridSpec(
            num_scalar_prefetch=0,
            grid=(g, nk),
            in_specs=[
                pl.BlockSpec((tm, D), lambda i, k: (i, 0)),   # x row tile
                pl.BlockSpec((tk, D), lambda i, k: (k, 0)),   # codebook chunk
                pl.BlockSpec((1, tk), lambda i, k: (0, k)),   # 0.5*||e||^2 chunk
            ],
            out_specs=pl.BlockSpec((1, 1, tm), lambda i, k: (i, 0, 0)),
            scratch_shapes=[
                pltpu.VMEM((tm, 1), jnp.float32),   # running min
                pltpu.VMEM((tm, 1), jnp.int32),     # running argmin
            ],
        ),
        compiler_params=pltpu.CompilerParams(
            dimension_semantics=("parallel", "arbitrary"),
            vmem_limit_bytes=int(vmem_cap),
        ),
    )(xf, emb32, e2_half)

    indices = idx_slab.reshape(-1)[:N]
    # Codeword gather stays outside the kernel (exact codebook rows, trivially
    # mem-bound) -- this is literally `self.embedding(indices)` from PyTorch.
    quantized = jnp.take(embedding, indices, axis=0)
    return quantized, indices.reshape(1, N)


if __name__ == "__main__":
    key = jax.random.PRNGKey(0)
    k_x, k_e = jax.random.split(key)

    num_embeddings = 64
    embedding_dim = 16

    # Input analogous to an NCHW conv feature map; flattened total must be
    # divisible by embedding_dim (as the PyTorch .view requires).
    x = jax.random.normal(k_x, (2, 4, 16, 16), dtype=jnp.float32)

    # nn.Embedding weight with .uniform_(-1, 1), deterministic init.
    embedding = jax.random.uniform(
        k_e, (num_embeddings, embedding_dim),
        minval=-1.0, maxval=1.0, dtype=jnp.float32)

    quantized, indices = vector_quantization(x, embedding)
    quantized = jax.block_until_ready(quantized)
    indices = jax.block_until_ready(indices)

    # Pure-JAX reference check (tolerant to float rounding on near-ties).
    xf = x.reshape(-1, embedding_dim)
    N = xf.shape[0]
    d_ref = jnp.sum((xf[:, None, :] - embedding[None, :, :]) ** 2, axis=-1)
    best = jnp.min(d_ref, axis=-1)
    chosen = d_ref[jnp.arange(N), indices[0]]

    assert quantized.shape == (N, embedding_dim)
    assert indices.shape == (1, N)
    assert bool(jnp.all((indices >= 0) & (indices < num_embeddings)))
    # The selected codeword must be a (numerically) optimal one.
    assert bool(jnp.allclose(chosen, best, atol=1e-4, rtol=1e-4))
    # Quantized rows must be the exact codebook rows for the returned indices.
    assert bool(jnp.allclose(quantized, embedding[indices[0]], atol=0.0))

    print("KERNEL_OK")
</pallas_src>

<mosaic_0001>
module attributes {stable_mosaic.version = 11 : i64} {
  func.func @_vq_argmin_kernel(%arg0: i32, %arg1: i32, %arg2: memref<128x16xf32, #tpu.memory_space<vmem>>, %arg3: memref<128x16xf32, #tpu.memory_space<vmem>>, %arg4: memref<1x128xf32, #tpu.memory_space<vmem>>, %arg5: memref<1x1x128xi32, #tpu.memory_space<vmem>>, %arg6: memref<128x1xf32, #tpu.memory_space<vmem>>, %arg7: memref<128x1xi32, #tpu.memory_space<vmem>>) attributes {dimension_semantics = [#tpu.dimension_semantics<parallel>, #tpu.dimension_semantics<arbitrary>], iteration_bounds = array<i64: 1, 1>, scalar_prefetch = 0 : i64, scratch_operands = 2 : i64, tpu.core_type = #tpu.core_type<tc>, window_params = [{transform_indices = @transform_0, window_bounds = array<i64: 128, 16>}, {transform_indices = @transform_1, window_bounds = array<i64: 128, 16>}, {transform_indices = @transform_2, window_bounds = array<i64: 1, 128>}, {transform_indices = @transform_3, window_bounds = array<i64: 1, 1, 128>}]} {
    %c0_i32 = arith.constant 0 : i32
    %0 = arith.cmpi eq, %arg1, %c0_i32 : i32
    %1 = arith.extui %0 : i1 to i32
    %c0_i32_0 = arith.constant 0 : i32
    %2 = arith.cmpi ne, %1, %c0_i32_0 : i32
    scf.if %2 {
      %cst_19 = arith.constant 0x7F800000 : f32
      %27 = vector.broadcast %cst_19 : f32 to vector<128x1xf32>
      %c0_20 = arith.constant 0 : index
      %c0_21 = arith.constant 0 : index
      %28 = vector.load %arg6[%c0_20, %c0_21] : memref<128x1xf32, #tpu.memory_space<vmem>>, vector<128x1xf32>
      tpu.vector_store %arg6[%c0_20, %c0_21], %27 {strides = array<i32>} : memref<128x1xf32, #tpu.memory_space<vmem>>, vector<128x1xf32>,
      %c0_i32_22 = arith.constant 0 : i32
      %29 = vector.broadcast %c0_i32_22 : i32 to vector<128x1xi32>
      %c0_23 = arith.constant 0 : index
      %c0_24 = arith.constant 0 : index
      %30 = vector.load %arg7[%c0_23, %c0_24] : memref<128x1xi32, #tpu.memory_space<vmem>>, vector<128x1xi32>
      tpu.vector_store %arg7[%c0_23, %c0_24], %29 {strides = array<i32>} : memref<128x1xi32, #tpu.memory_space<vmem>>, vector<128x1xi32>,
    } else {
    }
    %c0 = arith.constant 0 : index
    %c0_1 = arith.constant 0 : index
    %3 = vector.load %arg2[%c0, %c0_1] : memref<128x16xf32, #tpu.memory_space<vmem>>, vector<128x16xf32>
    %c0_2 = arith.constant 0 : index
    %c0_3 = arith.constant 0 : index
    %4 = vector.load %arg3[%c0_2, %c0_3] : memref<128x16xf32, #tpu.memory_space<vmem>>, vector<128x16xf32>
    %c0_4 = arith.constant 0 : index
    %c0_5 = arith.constant 0 : index
    %5 = vector.load %arg4[%c0_4, %c0_5] : memref<1x128xf32, #tpu.memory_space<vmem>>, vector<1x128xf32>
    %cst = arith.constant dense<0.000000e+00> : vector<128x128xf32>
    %6 = tpu.matmul %3, %4, %cst {dimension_numbers = #tpu.dot_dimension_numbers<[1], [1], [0], [0], [0, 0, 1, 0], [], []>} : vector<128x16xf32>, vector<128x16xf32>, vector<128x128xf32> -> vector<128x128xf32>
    %7 = vector.broadcast %5 : vector<1x128xf32> to vector<128x128xf32>
    %8 = arith.subf %7, %6 : vector<128x128xf32>
    %cst_6 = arith.constant dense<0x7F800000> : vector<128xf32>
    %9 = vector.multi_reduction <minimumf>, %8, %cst_6 [1] : vector<128x128xf32> to vector<128xf32>
    %10 = vector.shape_cast %9 : vector<128xf32> to vector<128x1xf32>
    %11 = tpu.reduce_index %8 {axis = 1 : i32, kind = #tpu.reduction_kind<arg_min>} : vector<128x128xf32> -> vector<128xi32>
    %12 = vector.shape_cast %11 : vector<128xi32> to vector<128x1xi32>
    %c128_i32 = arith.constant 128 : i32
    %13 = arith.muli %arg1, %c128_i32 : i32
    %14 = vector.broadcast %13 : i32 to vector<128x1xi32>
    %15 = arith.addi %12, %14 : vector<128x1xi32>
    %c0_7 = arith.constant 0 : index
    %c0_8 = arith.constant 0 : index
    %16 = vector.load %arg6[%c0_7, %c0_8] : memref<128x1xf32, #tpu.memory_space<vmem>>, vector<128x1xf32>
    %17 = arith.cmpf olt, %10, %16 : vector<128x1xf32>
    %c0_9 = arith.constant 0 : index
    %c0_10 = arith.constant 0 : index
    %18 = vector.load %arg6[%c0_9, %c0_10] : memref<128x1xf32, #tpu.memory_space<vmem>>, vector<128x1xf32>
    %19 = arith.select %17, %10, %18 : vector<128x1xi1>, vector<128x1xf32>
    %c0_11 = arith.constant 0 : index
    %c0_12 = arith.constant 0 : index
    %20 = vector.load %arg6[%c0_11, %c0_12] : memref<128x1xf32, #tpu.memory_space<vmem>>, vector<128x1xf32>
    tpu.vector_store %arg6[%c0_11, %c0_12], %19 {strides = array<i32>} : memref<128x1xf32, #tpu.memory_space<vmem>>, vector<128x1xf32>,
    %c0_13 = arith.constant 0 : index
    %c0_14 = arith.constant 0 : index
    %21 = vector.load %arg7[%c0_13, %c0_14] : memref<128x1xi32, #tpu.memory_space<vmem>>, vector<128x1xi32>
    %22 = arith.select %17, %15, %21 : vector<128x1xi1>, vector<128x1xi32>
    %c0_15 = arith.constant 0 : index
    %c0_16 = arith.constant 0 : index
    %23 = vector.load %arg7[%c0_15, %c0_16] : memref<128x1xi32, #tpu.memory_space<vmem>>, vector<128x1xi32>
    tpu.vector_store %arg7[%c0_15, %c0_16], %22 {strides = array<i32>} : memref<128x1xi32, #tpu.memory_space<vmem>>, vector<128x1xi32>,
    %c0_i32_17 = arith.constant 0 : i32
    %24 = arith.cmpi eq, %arg1, %c0_i32_17 : i32
    %25 = arith.extui %24 : i1 to i32
    %c0_i32_18 = arith.constant 0 : i32
    %26 = arith.cmpi ne, %25, %c0_i32_18 : i32
    scf.if %26 {
      %c0_19 = arith.constant 0 : index
      %c0_20 = arith.constant 0 : index
      %27 = vector.load %arg7[%c0_19, %c0_20] : memref<128x1xi32, #tpu.memory_space<vmem>>, vector<128x1xi32>
      %28 = vector.shape_cast %27 : vector<128x1xi32> to vector<1x1x128xi32>
      %c0_21 = arith.constant 0 : index
      %c0_22 = arith.constant 0 : index
      %c0_23 = arith.constant 0 : index
      %29 = vector.load %arg5[%c0_21, %c0_22, %c0_23] : memref<1x1x128xi32, #tpu.memory_space<vmem>>, vector<1x1x128xi32>
      tpu.vector_store %arg5[%c0_21, %c0_22, %c0_23], %28 {strides = array<i32>} : memref<1x1x128xi32, #tpu.memory_space<vmem>>, vector<1x1x128xi32>,
    } else {
    }
    return
  }
  func.func @transform_0(%arg0: i32, %arg1: i32) -> (i32, i32) {
    %c0_i32 = arith.constant 0 : i32
    %c0_i32_0 = arith.constant 0 : i32
    return %arg0, %c0_i32 : i32, i32
  }
  func.func @transform_1(%arg0: i32, %arg1: i32) -> (i32, i32) {
    %c0_i32 = arith.constant 0 : i32
    %c0_i32_0 = arith.constant 0 : i32
    return %arg1, %c0_i32 : i32, i32
  }
  func.func @transform_2(%arg0: i32, %arg1: i32) -> (i32, i32) {
    %c0_i32 = arith.constant 0 : i32
    %c0_i32_0 = arith.constant 0 : i32
    return %c0_i32, %arg1 : i32, i32
  }
  func.func @transform_3(%arg0: i32, %arg1: i32) -> (i32, i32, i32) {
    %c0_i32 = arith.constant 0 : i32
    %c0_i32_0 = arith.constant 0 : i32
    %c0_i32_1 = arith.constant 0 : i32
    return %arg0, %c0_i32, %c0_i32_0 : i32, i32, i32
  }
}

</mosaic_0001>

<llo_original>
// kernel: tpu_custom_call.1
$region0: #{tpu_custom_call.1}
  #allocation0 [shape = 'u32[]', space=smem, size = 0x4, offset = 0x4, fixed_abs, tag = 'smem constant byte address 0x4 - core index']
  #allocation1 [shape = 'u32[144,128]{1,0:T(1,128)}', space=vmem, size = 0x12000, scoped, tag = 'internal scratch']
  #allocation2 [shape = 'f32[128,1]{1,0:T(8,128)}', space=vmem, size = 0x10000, scoped, tag = 'scratch operand']
  #allocation3 [shape = 's32[128,1]{1,0:T(8,128)}', space=vmem, size = 0x10000, scoped, tag = 'scratch operand']
  %s0 = inlined_call_operand.vmem [shape: f32[128,16], index: 0, kind: input, shape index: {}]
  %s1 = inlined_call_operand.vmem [shape: f32[128,16], index: 1, kind: input, shape index: {}]
  %s2 = inlined_call_operand.vmem [shape: f32[1,128], index: 2, kind: input, shape index: {}]
  %s3 = inlined_call_operand.hbm [shape: s32[1,1,128], index: 3, kind: output, shape index: {}]
  %s4 = sld [smem:[#allocation0]]
  $region30: #{tpu_custom_call.1} parent=0
    _
  %s6 = ssub.s32 1, %s4
  %s7 = scalar_select 0, %s6, %s4
  $region1: #{tpu_custom_call.1} parent=0
    #allocation4 [shape = 'u8[512]{0}', space=vmem, size = 0x400, scoped, tag = 'output window, operand 0, single buffered']
    #allocation5 [shape = 's32[1]{0}', space=sflag, size = 0x4, scoped, tag = 'scoped memory for tpu_custom_call.1']
    %8 = vsyncpa [#allocation5], 0
    // Predicated region
    $region2: #{tpu_custom_call.1} parent=1 // pred_check
      _
    $region3: #{tpu_custom_call.1} parent=1 // pred_check_branch
      %10 = sbr.rel (0) target = $region5
    $region4: #{tpu_custom_call.1} parent=1 // pred_region
      _
    $region5: #{tpu_custom_call.1} parent=1 // pred_fallthru
      _
    // Predicated region
    $region6: #{tpu_custom_call.1} parent=1 // pred_check
      _
    $region7: #{tpu_custom_call.1} parent=1 // pred_check_branch
      %12 = sbr.rel (0) target = $region9
    $region8: #{tpu_custom_call.1} parent=1 // pred_region
      _
    $region9: #{tpu_custom_call.1} parent=1 // pred_fallthru
      _
    // Predicated region
    $region10: #{tpu_custom_call.1} parent=1 // pred_check
      _
    $region11: #{tpu_custom_call.1} parent=1 // pred_check_branch
      %14 = sbr.rel (0) target = $region13
    $region12: #{tpu_custom_call.1} parent=1 // pred_region
      _
    $region13: #{tpu_custom_call.1} parent=1 // pred_fallthru
      _
    %p15 = scmp.eq.s32.totalorder 0, 0
    // Predicated region
    $region14: #{tpu_custom_call.1} parent=1 // pred_check
      %p16 = pneg %p15
    $region15: #{tpu_custom_call.1} parent=1 // pred_check_branch
      %18 = sbr.rel (%p16) target = $region17
    $region16: #{tpu_custom_call.1} parent=1 // pred_region
      %vm19 = vcmask 7168
      %20 = vst.msk [vmem:[#allocation2] sm:$0xff] %vm19, inf
      %21 = vst.msk [vmem:[#allocation2 + $0x8] sm:$0xff] %vm19, inf
      %22 = vst.msk [vmem:[#allocation2 + $0x10] sm:$0xff] %vm19, inf
      %23 = vst.msk [vmem:[#allocation2 + $0x18] sm:$0xff] %vm19, inf
      %24 = vst.msk [vmem:[#allocation2 + $0x20] sm:$0xff] %vm19, inf
      %25 = vst.msk [vmem:[#allocation2 + $0x28] sm:$0xff] %vm19, inf
      %26 = vst.msk [vmem:[#allocation2 + $0x30] sm:$0xff] %vm19, inf
      %27 = vst.msk [vmem:[#allocation2 + $0x38] sm:$0xff] %vm19, inf
      %28 = vst.msk [vmem:[#allocation2 + $0x40] sm:$0xff] %vm19, inf
      %29 = vst.msk [vmem:[#allocation2 + $0x48] sm:$0xff] %vm19, inf
      %30 = vst.msk [vmem:[#allocation2 + $0x50] sm:$0xff] %vm19, inf
      %31 = vst.msk [vmem:[#allocation2 + $0x58] sm:$0xff] %vm19, inf
      %32 = vst.msk [vmem:[#allocation2 + $0x60] sm:$0xff] %vm19, inf
      %33 = vst.msk [vmem:[#allocation2 + $0x68] sm:$0xff] %vm19, inf
      %34 = vst.msk [vmem:[#allocation2 + $0x70] sm:$0xff] %vm19, inf
      %35 = vst.msk [vmem:[#allocation2 + $0x78] sm:$0xff] %vm19, inf
      %36 = vst.msk [vmem:[#allocation3] sm:$0xff] %vm19, 0
      %37 = vst.msk [vmem:[#allocation3 + $0x8] sm:$0xff] %vm19, 0
      %38 = vst.msk [vmem:[#allocation3 + $0x10] sm:$0xff] %vm19, 0
      %39 = vst.msk [vmem:[#allocation3 + $0x18] sm:$0xff] %vm19, 0
      %40 = vst.msk [vmem:[#allocation3 + $0x20] sm:$0xff] %vm19, 0
      %41 = vst.msk [vmem:[#allocation3 + $0x28] sm:$0xff] %vm19, 0
      %42 = vst.msk [vmem:[#allocation3 + $0x30] sm:$0xff] %vm19, 0
      %43 = vst.msk [vmem:[#allocation3 + $0x38] sm:$0xff] %vm19, 0
      %44 = vst.msk [vmem:[#allocation3 + $0x40] sm:$0xff] %vm19, 0
      %45 = vst.msk [vmem:[#allocation3 + $0x48] sm:$0xff] %vm19, 0
      %46 = vst.msk [vmem:[#allocation3 + $0x50] sm:$0xff] %vm19, 0
      %47 = vst.msk [vmem:[#allocation3 + $0x58] sm:$0xff] %vm19, 0
      %48 = vst.msk [vmem:[#allocation3 + $0x60] sm:$0xff] %vm19, 0
      %49 = vst.msk [vmem:[#allocation3 + $0x68] sm:$0xff] %vm19, 0
      %50 = vst.msk [vmem:[#allocation3 + $0x70] sm:$0xff] %vm19, 0
      %51 = vst.msk [vmem:[#allocation3 + $0x78] sm:$0xff] %vm19, 0
    $region17: #{tpu_custom_call.1} parent=1 // pred_fallthru
      _
    %v52 = vld [vmem:[%s0] sm:$0xff]
    %v53 = vld [vmem:[%s0 + $0x8] sm:$0xff]
    %v54 = vld [vmem:[%s0 + $0x10] sm:$0xff]
    %v55 = vld [vmem:[%s0 + $0x18] sm:$0xff]
    %v56 = vld [vmem:[%s0 + $0x20] sm:$0xff]
    %v57 = vld [vmem:[%s0 + $0x28] sm:$0xff]
    %v58 = vld [vmem:[%s0 + $0x30] sm:$0xff]
    %v59 = vld [vmem:[%s0 + $0x38] sm:$0xff]
    %v60 = vld [vmem:[%s0 + $0x40] sm:$0xff]
    %v61 = vld [vmem:[%s0 + $0x48] sm:$0xff]
    %v62 = vld [vmem:[%s0 + $0x50] sm:$0xff]
    %v63 = vld [vmem:[%s0 + $0x58] sm:$0xff]
    %v64 = vld [vmem:[%s0 + $0x60] sm:$0xff]
    %v65 = vld [vmem:[%s0 + $0x68] sm:$0xff]
    %v66 = vld [vmem:[%s0 + $0x70] sm:$0xff]
    %v67 = vld [vmem:[%s0 + $0x78] sm:$0xff]
    %v68 = vld [vmem:[%s1] sm:$0xff]
    %v69 = vld [vmem:[%s1 + $0x8] sm:$0xff]
    %v70 = vld [vmem:[%s1 + $0x10] sm:$0xff]
    %v71 = vld [vmem:[%s1 + $0x18] sm:$0xff]
    %v72 = vld [vmem:[%s1 + $0x20] sm:$0xff]
    %v73 = vld [vmem:[%s1 + $0x28] sm:$0xff]
    %v74 = vld [vmem:[%s1 + $0x30] sm:$0xff]
    %v75 = vld [vmem:[%s1 + $0x38] sm:$0xff]
    %v76 = vld [vmem:[%s1 + $0x40] sm:$0xff]
    %v77 = vld [vmem:[%s1 + $0x48] sm:$0xff]
    %v78 = vld [vmem:[%s1 + $0x50] sm:$0xff]
    %v79 = vld [vmem:[%s1 + $0x58] sm:$0xff]
    %v80 = vld [vmem:[%s1 + $0x60] sm:$0xff]
    %v81 = vld [vmem:[%s1 + $0x68] sm:$0xff]
    %v82 = vld [vmem:[%s1 + $0x70] sm:$0xff]
    %v83 = vld [vmem:[%s1 + $0x78] sm:$0xff]
    %v84 = vld [vmem:[%s2] sm:$0x1]
    %vm85 = vcmask 130048
    %v87 = vsel %vm85, %v52, 0
    %v90 = vsel %vm85, %v53, 0
    %v93 = vsel %vm85, %v54, 0
    %v96 = vsel %vm85, %v55, 0
    %v99 = vsel %vm85, %v56, 0
    %v102 = vsel %vm85, %v57, 0
    %v105 = vsel %vm85, %v58, 0
    %v108 = vsel %vm85, %v59, 0
    %v111 = vsel %vm85, %v60, 0
    %v114 = vsel %vm85, %v61, 0
    %v117 = vsel %vm85, %v62, 0
    %v120 = vsel %vm85, %v63, 0
    %v123 = vsel %vm85, %v64, 0
    %v126 = vsel %vm85, %v65, 0
    %v129 = vsel %vm85, %v66, 0
    %v132 = vsel %vm85, %v67, 0
    %v135 = vsel %vm85, %v68, 0
    %v138 = vsel %vm85, %v69, 0
    %v141 = vsel %vm85, %v70, 0
    %v144 = vsel %vm85, %v71, 0
    %v147 = vsel %vm85, %v72, 0
    %v150 = vsel %vm85, %v73, 0
    %v153 = vsel %vm85, %v74, 0
    %v156 = vsel %vm85, %v75, 0
    %v159 = vsel %vm85, %v76, 0
    %v162 = vsel %vm85, %v77, 0
    %v165 = vsel %vm85, %v78, 0
    %v168 = vsel %vm85, %v79, 0
    %v171 = vsel %vm85, %v80, 0
    %v174 = vsel %vm85, %v81, 0
    %v177 = vsel %vm85, %v82, 0
    %v180 = vsel %vm85, %v83, 0
    %182 = vmatprep.subr.mxu0 0.0
    %183 = vmatpush1.xpose.msra.mxu0 %v135
    %184 = vmatprep.subr.mxu0 0.0
    %185 = vmatpush1.xpose.msra.mxu0 %v138
    %186 = vmatprep.subr.mxu0 0.0
    %187 = vmatpush1.xpose.msra.mxu0 %v141
    %188 = vmatprep.subr.mxu0 0.0
    %189 = vmatpush1.xpose.msra.mxu0 %v144
    %190 = vmatprep.subr.mxu0 0.0
    %191 = vmatpush1.xpose.msra.mxu0 %v147
    %192 = vmatprep.subr.mxu0 0.0
    %193 = vmatpush1.xpose.msra.mxu0 %v150
    %194 = vmatprep.subr.mxu0 0.0
    %195 = vmatpush1.xpose.msra.mxu0 %v153
    %196 = vmatprep.subr.mxu0 0.0
    %197 = vmatpush1.xpose.msra.mxu0 %v156
    %198 = vmatprep.subr.mxu0 0.0
    %199 = vmatpush1.xpose.msra.mxu0 %v159
    %200 = vmatprep.subr.mxu0 0.0
    %201 = vmatpush1.xpose.msra.mxu0 %v162
    %202 = vmatprep.subr.mxu0 0.0
    %203 = vmatpush1.xpose.msra.mxu0 %v165
    %204 = vmatprep.subr.mxu0 0.0
    %205 = vmatpush1.xpose.msra.mxu0 %v168
    %206 = vmatprep.subr.mxu0 0.0
    %207 = vmatpush1.xpose.msra.mxu0 %v171
    %208 = vmatprep.subr.mxu0 0.0
    %209 = vmatpush1.xpose.msra.mxu0 %v174
    %210 = vmatprep.subr.mxu0 0.0
    %211 = vmatpush1.xpose.msra.mxu0 %v177
    %212 = vmatprep.subr.mxu0 0.0
    %213 = vmatpush1.xpose.msra.mxu0 %v180
    %214 = vmatprep.subr.mxu0 0.0
    %215 = vmatpush1.xpose.msra.mxu0 0.0
    %216 = vmatprep.subr.mxu0 0.0
    %217 = vmatpush1.xpose.msra.mxu0 0.0
    %218 = vmatprep.subr.mxu0 0.0
    %219 = vmatpush1.xpose.msra.mxu0 0.0
    %220 = vmatprep.subr.mxu0 0.0
    %221 = vmatpush1.xpose.msra.mxu0 0.0
    %222 = vmatprep.subr.mxu0 0.0
    %223 = vmatpush1.xpose.msra.mxu0 0.0
    %224 = vmatprep.subr.mxu0 0.0
    %225 = vmatpush1.xpose.msra.mxu0 0.0
    %226 = vmatprep.subr.mxu0 0.0
    %227 = vmatpush1.xpose.msra.mxu0 0.0
    %228 = vmatprep.subr.mxu0 0.0
    %229 = vmatpush1.xpose.msra.mxu0 0.0
    %230 = vmatprep.subr.mxu0 0.0
    %231 = vmatpush1.xpose.msra.mxu0 0.0
    %232 = vmatprep.subr.mxu0 0.0
    %233 = vmatpush1.xpose.msra.mxu0 0.0
    %234 = vmatprep.subr.mxu0 0.0
    %235 = vmatpush1.xpose.msra.mxu0 0.0
    %236 = vmatprep.subr.mxu0 0.0
    %237 = vmatpush1.xpose.msra.mxu0 0.0
    %238 = vmatprep.subr.mxu0 0.0
    %239 = vmatpush1.xpose.msra.mxu0 0.0
    %240 = vmatprep.subr.mxu0 0.0
    %241 = vmatpush1.xpose.msra.mxu0 0.0
    %242 = vmatprep.subr.mxu0 0.0
    %243 = vmatpush1.xpose.msra.mxu0 0.0
    %244 = vmatprep.subr.mxu0 0.0
    %245 = vmatpush1.xpose.msra.mxu0 0.0
    %246 = vmatprep.mubr.f32.mxu0 0.0
    %247 = vmatmul.mubr.f32.gmra.mrb[0].mxu0 %v87
    %v248 = vpop.f32.mrb[0].mxu0
    %v249 = vadd.f32 0.0, %v248
    %v250 = vpop.f32.mrb[0].mxu0
    %251 = vmatprep.mubr.f32.mxu0 0.0
    %252 = vmatmul.mubr.f32.gmra.mrb[0].mxu0 %v90
    %v253 = vpop.f32.mrb[0].mxu0
    %v254 = vadd.f32 0.0, %v253
    %v255 = vpop.f32.mrb[0].mxu0
    %256 = vmatprep.mubr.f32.mxu0 0.0
    %257 = vmatmul.mubr.f32.gmra.mrb[0].mxu0 %v93
    %v258 = vpop.f32.mrb[0].mxu0
    %v259 = vadd.f32 0.0, %v258
    %v260 = vpop.f32.mrb[0].mxu0
    %261 = vmatprep.mubr.f32.mxu0 0.0
    %262 = vmatmul.mubr.f32.gmra.mrb[0].mxu0 %v96
    %v263 = vpop.f32.mrb[0].mxu0
    %v264 = vadd.f32 0.0, %v263
    %v265 = vpop.f32.mrb[0].mxu0
    %266 = vmatprep.mubr.f32.mxu0 0.0
    %267 = vmatmul.mubr.f32.gmra.mrb[0].mxu0 %v99
    %v268 = vpop.f32.mrb[0].mxu0
    %v269 = vadd.f32 0.0, %v268
    %v270 = vpop.f32.mrb[0].mxu0
    %271 = vmatprep.mubr.f32.mxu0 0.0
    %272 = vmatmul.mubr.f32.gmra.mrb[0].mxu0 %v102
    %v273 = vpop.f32.mrb[0].mxu0
    %v274 = vadd.f32 0.0, %v273
    %v275 = vpop.f32.mrb[0].mxu0
    %276 = vmatprep.mubr.f32.mxu0 0.0
    %277 = vmatmul.mubr.f32.gmra.mrb[0].mxu0 %v105
    %v278 = vpop.f32.mrb[0].mxu0
    %v279 = vadd.f32 0.0, %v278
    %v280 = vpop.f32.mrb[0].mxu0
    %281 = vmatprep.mubr.f32.mxu0 0.0
    %282 = vmatmul.mubr.f32.gmra.mrb[0].mxu0 %v108
    %v283 = vpop.f32.mrb[0].mxu0
    %v284 = vadd.f32 0.0, %v283
    %v285 = vpop.f32.mrb[0].mxu0
    %286 = vmatprep.mubr.f32.mxu0 0.0
    %287 = vmatmul.mubr.f32.gmra.mrb[0].mxu0 %v111
    %v288 = vpop.f32.mrb[0].mxu0
    %v289 = vadd.f32 0.0, %v288
    %v290 = vpop.f32.mrb[0].mxu0
    %291 = vmatprep.mubr.f32.mxu0 0.0
    %292 = vmatmul.mubr.f32.gmra.mrb[0].mxu0 %v114
    %v293 = vpop.f32.mrb[0].mxu0
    %v294 = vadd.f32 0.0, %v293
    %v295 = vpop.f32.mrb[0].mxu0
    %296 = vmatprep.mubr.f32.mxu0 0.0
    %297 = vmatmul.mubr.f32.gmra.mrb[0].mxu0 %v117
    %v298 = vpop.f32.mrb[0].mxu0
    %v299 = vadd.f32 0.0, %v298
    %v300 = vpop.f32.mrb[0].mxu0
    %301 = vmatprep.mubr.f32.mxu0 0.0
    %302 = vmatmul.mubr.f32.gmra.mrb[0].mxu0 %v120
    %v303 = vpop.f32.mrb[0].mxu0
    %v304 = vadd.f32 0.0, %v303
    %v305 = vpop.f32.mrb[0].mxu0
    %306 = vmatprep.mubr.f32.mxu0 0.0
    %307 = vmatmul.mubr.f32.gmra.mrb[0].mxu0 %v123
    %v308 = vpop.f32.mrb[0].mxu0
    %v309 = vadd.f32 0.0, %v308
    %v310 = vpop.f32.mrb[0].mxu0
    %311 = vmatprep.mubr.f32.mxu0 0.0
    %312 = vmatmul.mubr.f32.gmra.mrb[0].mxu0 %v126
    %v313 = vpop.f32.mrb[0].mxu0
    %v314 = vadd.f32 0.0, %v313
    %v315 = vpop.f32.mrb[0].mxu0
    %316 = vmatprep.mubr.f32.mxu0 0.0
    %317 = vmatmul.mubr.f32.gmra.mrb[0].mxu0 %v129
    %v318 = vpop.f32.mrb[0].mxu0
    %v319 = vadd.f32 0.0, %v318
    %v320 = vpop.f32.mrb[0].mxu0
    %321 = vmatprep.mubr.f32.mxu0 0.0
    %322 = vmatmul.mubr.f32.gmra.mrb[0].mxu0 %v132
    %v323 = vpop.f32.mrb[0].mxu0
    %v324 = vadd.f32 0.0, %v323
    %v325 = vpop.f32.mrb[0].mxu0
    %326 = vdwg.mxu0
    %v328 = vlaneseq
    %v329 = vshrl.u32 %v328, 7
    %v330 = vsub.s32 0, %v329
    %v331 = vrot.slane %v84, %v330
    %v333 = vsub.f32 %v331, %v249
    %v334 = vsub.f32 %v331, %v254
    %v335 = vsub.f32 %v331, %v259
    %v336 = vsub.f32 %v331, %v264
    %v337 = vsub.f32 %v331, %v269
    %v338 = vsub.f32 %v331, %v274
    %v339 = vsub.f32 %v331, %v279
    %v340 = vsub.f32 %v331, %v284
    %v341 = vsub.f32 %v331, %v289
    %v342 = vsub.f32 %v331, %v294
    %v343 = vsub.f32 %v331, %v299
    %v344 = vsub.f32 %v331, %v304
    %v345 = vsub.f32 %v331, %v309
    %v346 = vsub.f32 %v331, %v314
    %v347 = vsub.f32 %v331, %v319
    %v348 = vsub.f32 %v331, %v324
    %349 = vmin.xlane.f32.xlu0 %v333
    %v350 = vpop.xlane.xlu0 %349
    %351 = vmin.xlane.f32.xlu0 %v334
    %v352 = vpop.xlane.xlu0 %351
    %353 = vmin.xlane.f32.xlu0 %v335
    %v354 = vpop.xlane.xlu0 %353
    %355 = vmin.xlane.f32.xlu0 %v336
    %v356 = vpop.xlane.xlu0 %355
    %357 = vmin.xlane.f32.xlu0 %v337
    %v358 = vpop.xlane.xlu0 %357
    %359 = vmin.xlane.f32.xlu0 %v338
    %v360 = vpop.xlane.xlu0 %359
    %361 = vmin.xlane.f32.xlu0 %v339
    %v362 = vpop.xlane.xlu0 %361
    %363 = vmin.xlane.f32.xlu0 %v340
    %v364 = vpop.xlane.xlu0 %363
    %365 = vmin.xlane.f32.xlu0 %v341
    %v366 = vpop.xlane.xlu0 %365
    %367 = vmin.xlane.f32.xlu0 %v342
    %v368 = vpop.xlane.xlu0 %367
    %369 = vmin.xlane.f32.xlu0 %v343
    %v370 = vpop.xlane.xlu0 %369
    %371 = vmin.xlane.f32.xlu0 %v344
    %v372 = vpop.xlane.xlu0 %371
    %373 = vmin.xlane.f32.xlu0 %v345
    %v374 = vpop.xlane.xlu0 %373
    %375 = vmin.xlane.f32.xlu0 %v346
    %v376 = vpop.xlane.xlu0 %375
    %377 = vmin.xlane.f32.xlu0 %v347
    %v378 = vpop.xlane.xlu0 %377
    %379 = vmin.xlane.f32.xlu0 %v348
    %v380 = vpop.xlane.xlu0 %379
    %381 = vmin.index.xlane.f32.xlu0 %v333
    %v382 = vpop.xlane.xlu0 %381
    %383 = vmin.index.xlane.f32.xlu0 %v334
    %v384 = vpop.xlane.xlu0 %383
    %385 = vmin.index.xlane.f32.xlu0 %v335
    %v386 = vpop.xlane.xlu0 %385
    %387 = vmin.index.xlane.f32.xlu0 %v336
    %v388 = vpop.xlane.xlu0 %387
    %389 = vmin.index.xlane.f32.xlu0 %v337
    %v390 = vpop.xlane.xlu0 %389
    %391 = vmin.index.xlane.f32.xlu0 %v338
    %v392 = vpop.xlane.xlu0 %391
    %393 = vmin.index.xlane.f32.xlu0 %v339
    %v394 = vpop.xlane.xlu0 %393
    %395 = vmin.index.xlane.f32.xlu0 %v340
    %v396 = vpop.xlane.xlu0 %395
    %397 = vmin.index.xlane.f32.xlu0 %v341
    %v398 = vpop.xlane.xlu0 %397
    %399 = vmin.index.xlane.f32.xlu0 %v342
    %v400 = vpop.xlane.xlu0 %399
    %401 = vmin.index.xlane.f32.xlu0 %v343
    %v402 = vpop.xlane.xlu0 %401
    %403 = vmin.index.xlane.f32.xlu0 %v344
    %v404 = vpop.xlane.xlu0 %403
    %405 = vmin.index.xlane.f32.xlu0 %v345
    %v406 = vpop.xlane.xlu0 %405
    %407 = vmin.index.xlane.f32.xlu0 %v346
    %v408 = vpop.xlane.xlu0 %407
    %409 = vmin.index.xlane.f32.xlu0 %v347
    %v410 = vpop.xlane.xlu0 %409
    %411 = vmin.index.xlane.f32.xlu0 %v348
    %v412 = vpop.xlane.xlu0 %411
    %s413 = smul.u32 0, 128
    %v414 = vstv %s413
    %v415 = vadd.s32 %v382, %v414
    %v416 = vadd.s32 %v384, %v414
    %v417 = vadd.s32 %v386, %v414
    %v418 = vadd.s32 %v388, %v414
    %v419 = vadd.s32 %v390, %v414
    %v420 = vadd.s32 %v392, %v414
    %v421 = vadd.s32 %v394, %v414
    %v422 = vadd.s32 %v396, %v414
    %v423 = vadd.s32 %v398, %v414
    %v424 = vadd.s32 %v400, %v414
    %v425 = vadd.s32 %v402, %v414
    %v426 = vadd.s32 %v404, %v414
    %v427 = vadd.s32 %v406, %v414
    %v428 = vadd.s32 %v408, %v414
    %v429 = vadd.s32 %v410, %v414
    %v430 = vadd.s32 %v412, %v414
    %v431 = vld [vmem:[#allocation2] sm:$0xff]
    %v432 = vld [vmem:[#allocation2 + $0x8] sm:$0xff]
    %v433 = vld [vmem:[#allocation2 + $0x10] sm:$0xff]
    %v434 = vld [vmem:[#allocation2 + $0x18] sm:$0xff]
    %v435 = vld [vmem:[#allocation2 + $0x20] sm:$0xff]
    %v436 = vld [vmem:[#allocation2 + $0x28] sm:$0xff]
    %v437 = vld [vmem:[#allocation2 + $0x30] sm:$0xff]
    %v438 = vld [vmem:[#allocation2 + $0x38] sm:$0xff]
    %v439 = vld [vmem:[#allocation2 + $0x40] sm:$0xff]
    %v440 = vld [vmem:[#allocation2 + $0x48] sm:$0xff]
    %v441 = vld [vmem:[#allocation2 + $0x50] sm:$0xff]
    %v442 = vld [vmem:[#allocation2 + $0x58] sm:$0xff]
    %v443 = vld [vmem:[#allocation2 + $0x60] sm:$0xff]
    %v444 = vld [vmem:[#allocation2 + $0x68] sm:$0xff]
    %v445 = vld [vmem:[#allocation2 + $0x70] sm:$0xff]
    %v446 = vld [vmem:[#allocation2 + $0x78] sm:$0xff]
    %vm447 = vcmp.lt.f32.partialorder %v350, %v431
    %vm448 = vcmp.lt.f32.partialorder %v352, %v432
    %vm449 = vcmp.lt.f32.partialorder %v354, %v433
    %vm450 = vcmp.lt.f32.partialorder %v356, %v434
    %vm451 = vcmp.lt.f32.partialorder %v358, %v435
    %vm452 = vcmp.lt.f32.partialorder %v360, %v436
    %vm453 = vcmp.lt.f32.partialorder %v362, %v437
    %vm454 = vcmp.lt.f32.partialorder %v364, %v438
    %vm455 = vcmp.lt.f32.partialorder %v366, %v439
    %vm456 = vcmp.lt.f32.partialorder %v368, %v440
    %vm457 = vcmp.lt.f32.partialorder %v370, %v441
    %vm458 = vcmp.lt.f32.partialorder %v372, %v442
    %vm459 = vcmp.lt.f32.partialorder %v374, %v443
    %vm460 = vcmp.lt.f32.partialorder %v376, %v444
    %vm461 = vcmp.lt.f32.partialorder %v378, %v445
    %vm462 = vcmp.lt.f32.partialorder %v380, %v446
    %v463 = vsel %vm447, %v350, %v431
    %v464 = vsel %vm448, %v352, %v432
    %v465 = vsel %vm449, %v354, %v433
    %v466 = vsel %vm450, %v356, %v434
    %v467 = vsel %vm451, %v358, %v435
    %v468 = vsel %vm452, %v360, %v436
    %v469 = vsel %vm453, %v362, %v437
    %v470 = vsel %vm454, %v364, %v438
    %v471 = vsel %vm455, %v366, %v439
    %v472 = vsel %vm456, %v368, %v440
    %v473 = vsel %vm457, %v370, %v441
    %v474 = vsel %vm458, %v372, %v442
    %v475 = vsel %vm459, %v374, %v443
    %v476 = vsel %vm460, %v376, %v444
    %v477 = vsel %vm461, %v378, %v445
    %v478 = vsel %vm462, %v380, %v446
    %vm479 = vcmask 7168
    %480 = vst.msk [vmem:[#allocation2] sm:$0xff] %vm479, %v463
    %481 = vst.msk [vmem:[#allocation2 + $0x8] sm:$0xff] %vm479, %v464
    %482 = vst.msk [vmem:[#allocation2 + $0x10] sm:$0xff] %vm479, %v465
    %483 = vst.msk [vmem:[#allocation2 + $0x18] sm:$0xff] %vm479, %v466
    %484 = vst.msk [vmem:[#allocation2 + $0x20] sm:$0xff] %vm479, %v467
    %485 = vst.msk [vmem:[#allocation2 + $0x28] sm:$0xff] %vm479, %v468
    %486 = vst.msk [vmem:[#allocation2 + $0x30] sm:$0xff] %vm479, %v469
    %487 = vst.msk [vmem:[#allocation2 + $0x38] sm:$0xff] %vm479, %v470
    %488 = vst.msk [vmem:[#allocation2 + $0x40] sm:$0xff] %vm479, %v471
    %489 = vst.msk [vmem:[#allocation2 + $0x48] sm:$0xff] %vm479, %v472
    %490 = vst.msk [vmem:[#allocation2 + $0x50] sm:$0xff] %vm479, %v473
    %491 = vst.msk [vmem:[#allocation2 + $0x58] sm:$0xff] %vm479, %v474
    %492 = vst.msk [vmem:[#allocation2 + $0x60] sm:$0xff] %vm479, %v475
    %493 = vst.msk [vmem:[#allocation2 + $0x68] sm:$0xff] %vm479, %v476
    %494 = vst.msk [vmem:[#allocation2 + $0x70] sm:$0xff] %vm479, %v477
    %495 = vst.msk [vmem:[#allocation2 + $0x78] sm:$0xff] %vm479, %v478
    %v496 = vld [vmem:[#allocation3] sm:$0xff]
    %v497 = vld [vmem:[#allocation3 + $0x8] sm:$0xff]
    %v498 = vld [vmem:[#allocation3 + $0x10] sm:$0xff]
    %v499 = vld [vmem:[#allocation3 + $0x18] sm:$0xff]
    %v500 = vld [vmem:[#allocation3 + $0x20] sm:$0xff]
    %v501 = vld [vmem:[#allocation3 + $0x28] sm:$0xff]
    %v502 = vld [vmem:[#allocation3 + $0x30] sm:$0xff]
    %v503 = vld [vmem:[#allocation3 + $0x38] sm:$0xff]
    %v504 = vld [vmem:[#allocation3 + $0x40] sm:$0xff]
    %v505 = vld [vmem:[#allocation3 + $0x48] sm:$0xff]
    %v506 = vld [vmem:[#allocation3 + $0x50] sm:$0xff]
    %v507 = vld [vmem:[#allocation3 + $0x58] sm:$0xff]
    %v508 = vld [vmem:[#allocation3 + $0x60] sm:$0xff]
    %v509 = vld [vmem:[#allocation3 + $0x68] sm:$0xff]
    %v510 = vld [vmem:[#allocation3 + $0x70] sm:$0xff]
    %v511 = vld [vmem:[#allocation3 + $0x78] sm:$0xff]
    %v512 = vsel %vm447, %v415, %v496
    %v513 = vsel %vm448, %v416, %v497
    %v514 = vsel %vm449, %v417, %v498
    %v515 = vsel %vm450, %v418, %v499
    %v516 = vsel %vm451, %v419, %v500
    %v517 = vsel %vm452, %v420, %v501
    %v518 = vsel %vm453, %v421, %v502
    %v519 = vsel %vm454, %v422, %v503
    %v520 = vsel %vm455, %v423, %v504
    %v521 = vsel %vm456, %v424, %v505
    %v522 = vsel %vm457, %v425, %v506
    %v523 = vsel %vm458, %v426, %v507
    %v524 = vsel %vm459, %v427, %v508
    %v525 = vsel %vm460, %v428, %v509
    %v526 = vsel %vm461, %v429, %v510
    %v527 = vsel %vm462, %v430, %v511
    %528 = vst.msk [vmem:[#allocation3] sm:$0xff] %vm479, %v512
    %529 = vst.msk [vmem:[#allocation3 + $0x8] sm:$0xff] %vm479, %v513
    %530 = vst.msk [vmem:[#allocation3 + $0x10] sm:$0xff] %vm479, %v514
    %531 = vst.msk [vmem:[#allocation3 + $0x18] sm:$0xff] %vm479, %v515
    %532 = vst.msk [vmem:[#allocation3 + $0x20] sm:$0xff] %vm479, %v516
    %533 = vst.msk [vmem:[#allocation3 + $0x28] sm:$0xff] %vm479, %v517
    %534 = vst.msk [vmem:[#allocation3 + $0x30] sm:$0xff] %vm479, %v518
    %535 = vst.msk [vmem:[#allocation3 + $0x38] sm:$0xff] %vm479, %v519
    %536 = vst.msk [vmem:[#allocation3 + $0x40] sm:$0xff] %vm479, %v520
    %537 = vst.msk [vmem:[#allocation3 + $0x48] sm:$0xff] %vm479, %v521
    %538 = vst.msk [vmem:[#allocation3 + $0x50] sm:$0xff] %vm479, %v522
    %539 = vst.msk [vmem:[#allocation3 + $0x58] sm:$0xff] %vm479, %v523
    %540 = vst.msk [vmem:[#allocation3 + $0x60] sm:$0xff] %vm479, %v524
    %541 = vst.msk [vmem:[#allocation3 + $0x68] sm:$0xff] %vm479, %v525
    %542 = vst.msk [vmem:[#allocation3 + $0x70] sm:$0xff] %vm479, %v526
    %543 = vst.msk [vmem:[#allocation3 + $0x78] sm:$0xff] %vm479, %v527
    // Predicated region
    $region18: #{tpu_custom_call.1} parent=1 // pred_check
      %p544 = pneg %p15
    $region19: #{tpu_custom_call.1} parent=1 // pred_check_branch
      %546 = sbr.rel (%p544) target = $region21
    $region20: #{tpu_custom_call.1} parent=1 // pred_region
      %v547 = vld [vmem:[#allocation3] sm:$0xff]
      %v548 = vld [vmem:[#allocation3 + $0x8] sm:$0xff]
      %v549 = vld [vmem:[#allocation3 + $0x10] sm:$0xff]
      %v550 = vld [vmem:[#allocation3 + $0x18] sm:$0xff]
      %v551 = vld [vmem:[#allocation3 + $0x20] sm:$0xff]
      %v552 = vld [vmem:[#allocation3 + $0x28] sm:$0xff]
      %v553 = vld [vmem:[#allocation3 + $0x30] sm:$0xff]
      %v554 = vld [vmem:[#allocation3 + $0x38] sm:$0xff]
      %v555 = vld [vmem:[#allocation3 + $0x40] sm:$0xff]
      %v556 = vld [vmem:[#allocation3 + $0x48] sm:$0xff]
      %v557 = vld [vmem:[#allocation3 + $0x50] sm:$0xff]
      %v558 = vld [vmem:[#allocation3 + $0x58] sm:$0xff]
      %v559 = vld [vmem:[#allocation3 + $0x60] sm:$0xff]
      %v560 = vld [vmem:[#allocation3 + $0x68] sm:$0xff]
      %v561 = vld [vmem:[#allocation3 + $0x70] sm:$0xff]
      %v562 = vld [vmem:[#allocation3 + $0x78] sm:$0xff]
      %563 = vset.pattern.permute.xlu0 0
      %564 = vperm.xlu0 %563, %v547
      %v565 = vpop.permute.xlu0 %564
      %566 = vset.pattern.permute.xlu0 0
      %567 = vperm.xlu0 %566, %v548
      %v568 = vpop.permute.xlu0 %567
      %569 = vset.pattern.permute.xlu0 0
      %570 = vperm.xlu0 %569, %v549
      %v571 = vpop.permute.xlu0 %570
      %572 = vset.pattern.permute.xlu0 0
      %573 = vperm.xlu0 %572, %v550
      %v574 = vpop.permute.xlu0 %573
      %575 = vset.pattern.permute.xlu0 0
      %576 = vperm.xlu0 %575, %v551
      %v577 = vpop.permute.xlu0 %576
      %578 = vset.pattern.permute.xlu0 0
      %579 = vperm.xlu0 %578, %v552
      %v580 = vpop.permute.xlu0 %579
      %581 = vset.pattern.permute.xlu0 0
      %582 = vperm.xlu0 %581, %v553
      %v583 = vpop.permute.xlu0 %582
      %584 = vset.pattern.permute.xlu0 0
      %585 = vperm.xlu0 %584, %v554
      %v586 = vpop.permute.xlu0 %585
      %587 = vset.pattern.permute.xlu0 0
      %588 = vperm.xlu0 %587, %v555
      %v589 = vpop.permute.xlu0 %588
      %590 = vset.pattern.permute.xlu0 0
      %591 = vperm.xlu0 %590, %v556
      %v592 = vpop.permute.xlu0 %591
      %593 = vset.pattern.permute.xlu0 0
      %594 = vperm.xlu0 %593, %v557
      %v595 = vpop.permute.xlu0 %594
      %596 = vset.pattern.permute.xlu0 0
      %597 = vperm.xlu0 %596, %v558
      %v598 = vpop.permute.xlu0 %597
      %599 = vset.pattern.permute.xlu0 0
      %600 = vperm.xlu0 %599, %v559
      %v601 = vpop.permute.xlu0 %600
      %602 = vset.pattern.permute.xlu0 0
      %603 = vperm.xlu0 %602, %v560
      %v604 = vpop.permute.xlu0 %603
      %605 = vset.pattern.permute.xlu0 0
      %606 = vperm.xlu0 %605, %v561
      %v607 = vpop.permute.xlu0 %606
      %608 = vset.pattern.permute.xlu0 0
      %609 = vperm.xlu0 %608, %v562
      %v610 = vpop.permute.xlu0 %609
      %v611 = vlaneseq
      %v612 = vand.u32 %v611, 127
      %v613 = vlaneseq
      %v614 = vshrl.u32 %v613, 7
      %v615 = vsub.s32 %v612, %v614
      %v616 = vrot.slane %v565, %v615
      %v617 = vadd.s32 %v612, 4294967288
      %v618 = vlaneseq
      %v619 = vshrl.u32 %v618, 7
      %v620 = vsub.s32 %v617, %v619
      %v621 = vrot.slane %v568, %v620
      %vm622 = vcmask 130112
      %v623 = vsel %vm622, %v621, %v616
      %v624 = vadd.s32 %v612, 4294967280
      %v625 = vlaneseq
      %v626 = vshrl.u32 %v625, 7
      %v627 = vsub.s32 %v624, %v626
      %v628 = vrot.slane %v571, %v627
      %vm629 = vcmask 195712
      %v630 = vsel %vm629, %v628, %v623
      %v631 = vadd.s32 %v612, 4294967272
      %v632 = vlaneseq
      %v633 = vshrl.u32 %v632, 7
      %v634 = vsub.s32 %v631, %v633
      %v635 = vrot.slane %v574, %v634
      %vm636 = vcmask 261312
      %v637 = vsel %vm636, %v635, %v630
      %v638 = vadd.s32 %v612, 4294967264
      %v639 = vlaneseq
      %v640 = vshrl.u32 %v639, 7
      %v641 = vsub.s32 %v638, %v640
      %v642 = vrot.slane %v577, %v641
      %vm643 = vcmask 326912
      %v644 = vsel %vm643, %v642, %v637
      %v645 = vadd.s32 %v612, 4294967256
      %v646 = vlaneseq
      %v647 = vshrl.u32 %v646, 7
      %v648 = vsub.s32 %v645, %v647
      %v649 = vrot.slane %v580, %v648
      %vm650 = vcmask 392512
      %v651 = vsel %vm650, %v649, %v644
      %v652 = vadd.s32 %v612, 4294967248
      %v653 = vlaneseq
      %v654 = vshrl.u32 %v653, 7
      %v655 = vsub.s32 %v652, %v654
      %v656 = vrot.slane %v583, %v655
      %vm657 = vcmask 458112
      %v658 = vsel %vm657, %v656, %v651
      %v659 = vadd.s32 %v612, 4294967240
      %v660 = vlaneseq
      %v661 = vshrl.u32 %v660, 7
      %v662 = vsub.s32 %v659, %v661
      %v663 = vrot.slane %v586, %v662
      %vm664 = vcmask 523712
      %v665 = vsel %vm664, %v663, %v658
      %v666 = vadd.s32 %v612, 4294967232
      %v667 = vlaneseq
      %v668 = vshrl.u32 %v667, 7
      %v669 = vsub.s32 %v666, %v668
      %v670 = vrot.slane %v589, %v669
      %vm671 = vcmask 589312
      %v672 = vsel %vm671, %v670, %v665
      %v673 = vadd.s32 %v612, 4294967224
      %v674 = vlaneseq
      %v675 = vshrl.u32 %v674, 7
      %v676 = vsub.s32 %v673, %v675
      %v677 = vrot.slane %v592, %v676
      %vm678 = vcmask 654912
      %v679 = vsel %vm678, %v677, %v672
      %v680 = vadd.s32 %v612, 4294967216
      %v681 = vlaneseq
      %v682 = vshrl.u32 %v681, 7
      %v683 = vsub.s32 %v680, %v682
      %v684 = vrot.slane %v595, %v683
      %vm685 = vcmask 720512
      %v686 = vsel %vm685, %v684, %v679
      %v687 = vadd.s32 %v612, 4294967208
      %v688 = vlaneseq
      %v689 = vshrl.u32 %v688, 7
      %v690 = vsub.s32 %v687, %v689
      %v691 = vrot.slane %v598, %v690
      %vm692 = vcmask 786112
      %v693 = vsel %vm692, %v691, %v686
      %v694 = vadd.s32 %v612, 4294967200
      %v695 = vlaneseq
      %v696 = vshrl.u32 %v695, 7
      %v697 = vsub.s32 %v694, %v696
      %v698 = vrot.slane %v601, %v697
      %vm699 = vcmask 851712
      %v700 = vsel %vm699, %v698, %v693
      %v701 = vadd.s32 %v612, 4294967192
      %v702 = vlaneseq
      %v703 = vshrl.u32 %v702, 7
      %v704 = vsub.s32 %v701, %v703
      %v705 = vrot.slane %v604, %v704
      %vm706 = vcmask 917312
      %v707 = vsel %vm706, %v705, %v700
      %v708 = vadd.s32 %v612, 4294967184
      %v709 = vlaneseq
      %v710 = vshrl.u32 %v709, 7
      %v711 = vsub.s32 %v708, %v710
      %v712 = vrot.slane %v607, %v711
      %vm713 = vcmask 982912
      %v714 = vsel %vm713, %v712, %v707
      %v715 = vadd.s32 %v612, 4294967176
      %v716 = vlaneseq
      %v717 = vshrl.u32 %v716, 7
      %v718 = vsub.s32 %v715, %v717
      %v719 = vrot.slane %v610, %v718
      %vm720 = vcmask 1048512
      %v721 = vsel %vm720, %v719, %v714
      %722 = vst [vmem:[#allocation4] sm:$0x1] %v721
    $region21: #{tpu_custom_call.1} parent=1 // pred_fallthru
      _
    // Predicated region
    $region22: #{tpu_custom_call.1} parent=1 // pred_check
      _
    $region23: #{tpu_custom_call.1} parent=1 // pred_check_branch
      %724 = sbr.rel (0) target = $region25
    $region24: #{tpu_custom_call.1} parent=1 // pred_region
      %s726 = ssub.s32 16, 16
      %727 = vsyncadd [#allocation5], %s726
      %s729 = sshll.u32 [#allocation4], 4
      %s730 = int_to_ptr.vmem [resolvable:$true] %s729
      %732 = dma.vmem_to_hbm [thread:$0]  %s730, 16, %s3, [#allocation5]
    $region25: #{tpu_custom_call.1} parent=1 // pred_fallthru
      _
    // Predicated region
    $region26: #{tpu_custom_call.1} parent=1 // pred_check
      _
    $region27: #{tpu_custom_call.1} parent=1 // pred_check_branch
      %734 = sbr.rel (0) target = $region29
    $region28: #{tpu_custom_call.1} parent=1 // pred_region
      %735 = dma.done [#allocation5], 16
    $region29: #{tpu_custom_call.1} parent=1 // pred_fallthru
      _
    %736 = vsyncpa [#allocation5], 1

</llo_original>
